<compile_context>
chip_gen: v5e
topology: v5e:2x2
jax: 0.10.0
libtpu: 0.0.40
codegen_flags: <defaults>
</compile_context>

<pallas_src>
import functools
import math

import jax
import jax.numpy as jnp
from jax.experimental import pallas as pl
from jax.experimental.pallas import tpu as pltpu


# ---------------------------------------------------------------------------
# pltpu.roll direction probe (robust to either rotate convention)
# ---------------------------------------------------------------------------
_ROLL_MATCHES_NUMPY = None


def _roll_matches_numpy():
    """pltpu.roll is expected to follow np.roll (out[i] = x[i - shift]); probe the
    lowering once so the rotate-half shift pairing is correct either way."""
    global _ROLL_MATCHES_NUMPY
    if _ROLL_MATCHES_NUMPY is None:
        def probe(x_ref, o_ref):
            o_ref[...] = pltpu.roll(x_ref[...], 1, axis=1)

        x = jax.lax.broadcasted_iota(jnp.float32, (8, 128), 1)
        out = pl.pallas_call(
            probe, out_shape=jax.ShapeDtypeStruct((8, 128), jnp.float32)
        )(x)
        _ROLL_MATCHES_NUMPY = bool(jnp.isclose(out[0, 0], 127.0))
    return _ROLL_MATCHES_NUMPY


def _rotate_shifts(head_dim, lane_block):
    """Static shifts so that, over the last axis of size `lane_block`:
         roll(x, s_plus )[p] == x[p + head_dim//2]
         roll(x, s_minus)[p] == x[p - head_dim//2]
    (wrap-around lanes are never selected by the first/second-half mask)."""
    half = head_dim // 2
    s_plus = (lane_block - half) % lane_block   # np.roll(x, -half)
    s_minus = half                              # np.roll(x, +half)
    if not _roll_matches_numpy():
        s_plus, s_minus = s_minus, s_plus
    return s_plus, s_minus


# ---------------------------------------------------------------------------
# Tiling helpers
# ---------------------------------------------------------------------------
def choose_lane_block(head_dim, total_width, max_lanes=None):
    """Lane-block width.  Default (max_lanes=None): the full packed width H*D, so
    each block row is a contiguous HBM run and the head-group grid axis collapses.
    If capped, pick a multiple of lcm(D, 128) dividing H*D; else fall back to H*D."""
    if max_lanes is None or max_lanes >= total_width:
        return total_width
    base = (head_dim * 128) // math.gcd(head_dim, 128)   # lcm(D, 128)
    if base > total_width or total_width % base != 0 or base > max_lanes:
        return total_width
    lane_block = base
    while lane_block * 2 <= max_lanes and total_width % (lane_block * 2) == 0:
        lane_block *= 2
    return lane_block


def _choose_seq_tile(seq_len, lane_block, x_itemsize, cache_itemsize,
                     cache_buffers, budget_bytes, max_rows=2048):
    """Sequence-tile rows derived from a VMEM byte budget for the per-step working
    set: 2x double-buffered x + 2x double-buffered out + cache_buffers x 2 caches.
    Keeps v7x (64 MiB VMEM, 32 MiB scoped) safe while staying in the >=85%-of-HBM-
    roofline large-block regime on v5e/v6e."""
    per_row = lane_block * (4 * x_itemsize + 2 * cache_buffers * cache_itemsize)
    t = max(8, min(max_rows, budget_bytes // per_row))
    t = (t // 8) * 8
    if seq_len <= t:
        return seq_len          # full extent is always a legal block dim
    return t


def _default_compute_dtype(x_dtype):
    """bf16 compute on bf16-native VALUs (v6e/v7x); f32 everywhere else."""
    if jnp.dtype(x_dtype) == jnp.dtype(jnp.bfloat16):
        try:
            kind = jax.devices()[0].device_kind.lower()
        except Exception:
            kind = ""
        if not any(v in kind for v in ("v2", "v3", "v4", "v5")):
            return jnp.bfloat16
    return jnp.float32


# ---------------------------------------------------------------------------
# Caches (same math as the PyTorch Rope.__init__) with the rotate-half sign folded
# into a single signed sin cache.
# ---------------------------------------------------------------------------
def make_rope_caches(slen, head_dim, lane_block, dtype=jnp.float32):
    """Returns cos_c, sin_c of shape (slen, lane_block); lane_block packs
    lane_block // head_dim identical per-head patterns.  sin_c carries the
    rotate-half sign (-sin on the first half of each head, +sin on the second), so
    the kernel is x*cos + select(first_half, x[p+D/2], x[p-D/2]) * sin_c."""
    d = head_dim
    assert d % 2 == 0 and lane_block % d == 0
    g = lane_block // d
    inv_freq = 1.0 / (10000.0 ** (jnp.arange(0, d, 2, dtype=jnp.float32) / d))
    t = jnp.arange(slen, dtype=jnp.float32)
    angles = jnp.einsum("i,j->ij", t, inv_freq)            # (slen, d/2)
    angles = jnp.concatenate((angles, angles), axis=-1)    # (slen, d)
    cos_h = jnp.cos(angles)
    sin_h = jnp.sin(angles)
    first_half = jnp.arange(d) < (d // 2)                  # (d,)
    sin_signed = jnp.where(first_half, -sin_h, sin_h)
    pack = lambda c: jnp.tile(c, (1, g)).astype(dtype)
    return pack(cos_h), pack(sin_signed)


# ---------------------------------------------------------------------------
# Kernel + wrapper
# ---------------------------------------------------------------------------
def _rope_kernel(x_ref, cos_ref, sin_ref, o_ref, *,
                 s_plus, s_minus, head_dim, compute_dtype):
    # All blocks are (tS, L): sequence rows x packed lanes (L = heads_per_block * D).
    x = x_ref[...].astype(compute_dtype)
    cos = cos_ref[...].astype(compute_dtype)
    sin = sin_ref[...].astype(compute_dtype)
    x_p = pltpu.roll(x, s_plus, axis=1)    # lane p <- x[p + D/2]   (XLU slot)
    x_m = pltpu.roll(x, s_minus, axis=1)   # lane p <- x[p - D/2]
    lane = jax.lax.broadcasted_iota(jnp.int32, x.shape, 1)
    first_half = (lane % head_dim) < (head_dim // 2)
    rot = jnp.where(first_half, x_p, x_m)  # select also masks roll wrap-around
    o_ref[...] = (x * cos + rot * sin).astype(o_ref.dtype)


def rope_forward(x_bshd, head_dim, cos_c, sin_c, *,
                 compute_dtype=None, vmem_budget_bytes=12 * 1024 * 1024,
                 donate_input=False, single_buffer_caches=True):
    """Apply RoPE to x of shape (B, S, H, D) (pre-head-transpose layout).

    Mathematically identical to the PyTorch Rope.forward applied to the transposed
    (B, H, S, D) tensor, since cos/sin broadcast over batch and heads.
    """
    B, S, H, D = x_bshd.shape
    assert D == head_dim and D % 2 == 0
    HD = H * D
    L = cos_c.shape[-1]
    assert cos_c.shape == (S, L) and sin_c.shape == (S, L)
    assert L % D == 0 and HD % L == 0
    G = HD // L                          # head-groups per row (1 when L == HD)

    if compute_dtype is None:
        compute_dtype = _default_compute_dtype(x_bshd.dtype)

    x_itemsize = jnp.dtype(x_bshd.dtype).itemsize
    c_itemsize = jnp.dtype(cos_c.dtype).itemsize
    cache_bufs = 1 if single_buffer_caches else 2
    tS = _choose_seq_tile(S, L, x_itemsize, c_itemsize, cache_bufs,
                          vmem_budget_bytes)
    s_tiles = pl.cdiv(S, tS)             # partial trailing S blocks are masked

    x_packed = x_bshd.reshape(B, S, HD)  # free reshape -> lane-dense layout
    s_plus, s_minus = _rotate_shifts(D, L)
    kernel = functools.partial(_rope_kernel, s_plus=s_plus, s_minus=s_minus,
                               head_dim=D, compute_dtype=compute_dtype)

    # Advisory cost: short, purely memory-bound op -> let XLA overlap it.
    cost = pl.CostEstimate(
        flops=6 * B * S * HD,
        transcendentals=0,
        bytes_accessed=2 * B * S * HD * x_itemsize + 2 * S * L * c_itemsize,
    )

    def build_and_call(use_single_buffer_caches):
        cache_kwargs = (
            {"pipeline_mode": pl.Buffered(1)} if use_single_buffer_caches else {}
        )
        extra = {"input_output_aliases": {0: 0}} if donate_input else {}
        return pl.pallas_call(
            kernel,
            out_shape=jax.ShapeDtypeStruct((B, S, HD), x_bshd.dtype),
            grid_spec=pltpu.PrefetchScalarGridSpec(
                num_scalar_prefetch=0,
                # S-tile axis outermost: cos/sin blocks (indexed only by it) stay
                # VMEM-resident across the whole inner (batch, head-group) sweep.
                # Batch stays in the grid so megacore (v7x) has an axis to split.
                grid=(s_tiles, B, G),
                in_specs=[
                    pl.BlockSpec((None, tS, L), lambda si, b, gi: (b, si, gi)),
                    pl.BlockSpec((tS, L), lambda si, b, gi: (si, 0), **cache_kwargs),
                    pl.BlockSpec((tS, L), lambda si, b, gi: (si, 0), **cache_kwargs),
                ],
                out_specs=pl.BlockSpec((None, tS, L), lambda si, b, gi: (b, si, gi)),
            ),
            compiler_params=pltpu.CompilerParams(
                dimension_semantics=("parallel", "parallel", "parallel"),
                vmem_limit_bytes=32 * 1024 * 1024,
            ),
            cost_estimate=cost,
            **extra,
        )(x_packed, cos_c, sin_c)

    if single_buffer_caches:
        try:
            out = build_and_call(True)
        except Exception:
            # Older Pallas builds may reject buffer_count=1; default buffering is
            # functionally identical, just uses a bit more VMEM.
            out = build_and_call(False)
    else:
        out = build_and_call(False)
    return out.reshape(B, S, H, D)


# ---------------------------------------------------------------------------
# References (demo-only, pure JAX)
# ---------------------------------------------------------------------------
def rope_reference_bhsd(x_bhsd):
    """Original PyTorch Rope.forward semantics on (B, H, S, D)."""
    _, _, S, D = x_bhsd.shape
    inv_freq = 1.0 / (10000.0 ** (jnp.arange(0, D, 2, dtype=jnp.float32) / D))
    t = jnp.arange(S, dtype=jnp.float32)
    angles = jnp.einsum("i,j->ij", t, inv_freq)
    angles = jnp.concatenate((angles, angles), axis=-1)
    cos = jnp.cos(angles)[None, None]
    sin = jnp.sin(angles)[None, None]
    x1 = x_bhsd[..., : D // 2]
    x2 = x_bhsd[..., D // 2:]
    rot = jnp.concatenate((-x2, x1), axis=-1)
    return x_bhsd * cos + rot * sin


def rope_reference_packed(x_bshd, cos_c, sin_c):
    """Pure-JAX replica of the packed kernel math (same caches, f32 compute)."""
    B, S, H, D = x_bshd.shape
    HD = H * D
    L = cos_c.shape[-1]
    g = HD // L
    xf = x_bshd.reshape(B, S, HD).astype(jnp.float32)
    cf = jnp.tile(cos_c.astype(jnp.float32), (1, g))
    sf = jnp.tile(sin_c.astype(jnp.float32), (1, g))
    lane = jnp.arange(HD)
    first_half = (lane % D) < (D // 2)
    half = D // 2
    rot = jnp.where(first_half,
                    jnp.roll(xf, -half, axis=-1),
                    jnp.roll(xf, half, axis=-1))
    out = xf * cf + rot * sf
    return out.astype(x_bshd.dtype).reshape(B, S, H, D)


if __name__ == "__main__":
    # Small shapes consistent with the module: batch=2, heads=4, seq=8, head_dim=32.
    # 4 heads * 32 = 128 packed lanes -> full-width, fully contiguous blocks.
    B, H, S, D = 2, 4, 8, 32
    key = jax.random.PRNGKey(0)
    x = jax.random.normal(key, (B, S, H, D), dtype=jnp.float32)

    L = choose_lane_block(D, H * D)                 # -> H*D (contiguous rows)
    cos_c, sin_c = make_rope_caches(S, D, L, dtype=x.dtype)

    out = jax.block_until_ready(rope_forward(x, D, cos_c, sin_c))
    assert out.shape == x.shape and out.dtype == x.dtype

    # Check against the original (B, H, S, D) PyTorch Rope math.
    ref = jnp.transpose(
        rope_reference_bhsd(jnp.transpose(x, (0, 2, 1, 3))), (0, 2, 1, 3))
    assert jnp.allclose(out, ref, atol=1e-5, rtol=1e-5)

    # bf16 path: bf16 caches (half the cache HBM traffic); compute dtype is bf16 on
    # v6e/v7x (bf16-native VALUs) and f32 on v5e and older, chosen automatically.
    # Note: bf16 caches quantize the rotation slightly (inference-grade accuracy).
    xb = x.astype(jnp.bfloat16)
    cb, sb = make_rope_caches(S, D, L, dtype=jnp.bfloat16)
    outb = jax.block_until_ready(rope_forward(xb, D, cb, sb))
    refb = rope_reference_packed(xb, cb, sb)
    assert outb.dtype == jnp.bfloat16
    assert jnp.allclose(outb.astype(jnp.float32), refb.astype(jnp.float32),
                        atol=3e-2, rtol=3e-2)

    print("KERNEL_OK")
</pallas_src>

<mosaic_0001>
module attributes {stable_mosaic.version = 11 : i64} {
  func.func @probe(%arg0: memref<8x128xf32, #tpu.memory_space<vmem>>, %arg1: memref<8x128xf32, #tpu.memory_space<vmem>>) attributes {dimension_semantics = [], scalar_prefetch = 0 : i64, scratch_operands = 0 : i64, tpu.core_type = #tpu.core_type<tc>} {
    %c0 = arith.constant 0 : index
    %c0_0 = arith.constant 0 : index
    %0 = vector.load %arg0[%c0, %c0_0] : memref<8x128xf32, #tpu.memory_space<vmem>>, vector<8x128xf32>
    %c1_i32 = arith.constant 1 : i32
    %1 = tpu.dynamic_rotate %0 by %c1_i32 dim 1 : vector<8x128xf32>, i32 -> vector<8x128xf32>
    %c0_1 = arith.constant 0 : index
    %c0_2 = arith.constant 0 : index
    %2 = vector.load %arg1[%c0_1, %c0_2] : memref<8x128xf32, #tpu.memory_space<vmem>>, vector<8x128xf32>
    tpu.vector_store %arg1[%c0_1, %c0_2], %1 {strides = array<i32>} : memref<8x128xf32, #tpu.memory_space<vmem>>, vector<8x128xf32>,
    return
  }
}

</mosaic_0001>

<llo_original>
// kernel: tpu_custom_call.1
$region0: #{tpu_custom_call.1}
  #allocation0 [shape = 'u32[]', space=smem, size = 0x4, offset = 0x4, fixed_abs, tag = 'smem constant byte address 0x4 - core index']
  #allocation1 [shape = 'u32[72,128]{1,0:T(1,128)}', space=vmem, size = 0x9000, scoped, tag = 'internal scratch']
  %s0 = inlined_call_operand.hbm [shape: f32[8,128], index: 0, kind: input, shape index: {}]
  %s1 = inlined_call_operand.hbm [shape: f32[8,128], index: 1, kind: output, shape index: {}]
  %s2 = sld [smem:[#allocation0]]
  $region18: #{tpu_custom_call.1} parent=0
    _
  %s4 = ssub.s32 1, %s2
  %s5 = scalar_select 0, %s4, %s2
  $region1: #{tpu_custom_call.1} parent=0
    #allocation2 [shape = 'u8[4096]{0}', space=vmem, size = 0x1000, scoped, tag = 'input window, operand 0, single buffered']
    #allocation3 [shape = 's32[1]{0}', space=sflag, size = 0x4, scoped, tag = 'scoped memory for tpu_custom_call.1']
    #allocation4 [shape = 's32[1]{0}', space=sflag, size = 0x4, scoped, tag = 'scoped memory for tpu_custom_call.1']
    #allocation5 [shape = 'u8[4096]{0}', space=vmem, size = 0x1000, scoped, tag = 'output window, operand 0, single buffered']
    %6 = vsyncpa [#allocation3], 0
    %7 = vsyncpa [#allocation4], 0
    // Predicated region
    $region2: #{tpu_custom_call.1} parent=1 // pred_check
      _
    $region3: #{tpu_custom_call.1} parent=1 // pred_check_branch
      %9 = sbr.rel (0) target = $region5
    $region4: #{tpu_custom_call.1} parent=1 // pred_region
      %11 = vsyncadd [#allocation3], 0
      %s13 = sshll.u32 %s0, 4
      %s14 = int_to_ptr.hbm [resolvable:$true] %s13
      %s15 = sshll.u32 [#allocation2], 4
      %s16 = int_to_ptr.vmem [resolvable:$true] %s15
      %18 = dma.hbm_to_vmem [thread:$0]  %s14, 128, %s16, [#allocation3]
    $region5: #{tpu_custom_call.1} parent=1 // pred_fallthru
      _
    // Predicated region
    $region6: #{tpu_custom_call.1} parent=1 // pred_check
      _
    $region7: #{tpu_custom_call.1} parent=1 // pred_check_branch
      %20 = sbr.rel (0) target = $region9
    $region8: #{tpu_custom_call.1} parent=1 // pred_region
      %22 = dma.done [#allocation3], 128
    $region9: #{tpu_custom_call.1} parent=1 // pred_fallthru
      _
    %v23 = vld [vmem:[#allocation2] sm:$0xff]
    %24 = vrot.lane.b32.xlu0 %v23, 1
    %v25 = vpop.permute.xlu0 %24
    %26 = vst [vmem:[#allocation5] sm:$0xff] %v25
    // Predicated region
    $region10: #{tpu_custom_call.1} parent=1 // pred_check
      _
    $region11: #{tpu_custom_call.1} parent=1 // pred_check_branch
      %28 = sbr.rel (0) target = $region13
    $region12: #{tpu_custom_call.1} parent=1 // pred_region
      %30 = vsyncadd [#allocation4], 0
      %s32 = sshll.u32 [#allocation5], 4
      %s33 = int_to_ptr.vmem [resolvable:$true] %s32
      %s34 = sshll.u32 %s1, 4
      %s35 = int_to_ptr.hbm [resolvable:$true] %s34
      %37 = dma.vmem_to_hbm [thread:$0]  %s33, 128, %s35, [#allocation4]
    $region13: #{tpu_custom_call.1} parent=1 // pred_fallthru
      _
    // Predicated region
    $region14: #{tpu_custom_call.1} parent=1 // pred_check
      _
    $region15: #{tpu_custom_call.1} parent=1 // pred_check_branch
      %39 = sbr.rel (0) target = $region17
    $region16: #{tpu_custom_call.1} parent=1 // pred_region
      %41 = dma.done [#allocation4], 128
    $region17: #{tpu_custom_call.1} parent=1 // pred_fallthru
      _
    %42 = vsyncpa [#allocation3], 1
    %43 = vsyncpa [#allocation4], 1

</llo_original>
